<compile_context>
chip_gen: v7x
topology: tpu7x:2x2x1
jax: 0.10.0
libtpu: 0.0.40
codegen_flags: <defaults>
</compile_context>

<pallas_src>
import functools

import jax
import jax.numpy as jnp
from jax.experimental import pallas as pl
from jax.experimental.pallas import tpu as pltpu


def _round_up(x, m):
    return ((x + m - 1) // m) * m


def _dowce_kernel(pred_ref, tgt_ref, area_ref, params_ref, out_ref, acc_ref,
                  *, n_valid, steps_per_core):
    s = pl.program_id(1)

    @pl.when(s == 0)
    def _init():
        acc_ref[...] = jnp.zeros_like(acc_ref)

    logits = pred_ref[...].astype(jnp.float32)        # [TM, C]
    tgt = tgt_ref[...]                                # [TM, 1] i32
    area = area_ref[...].astype(jnp.float32)          # [TM, 1]
    params = params_ref[...]                          # [C, 4] f32: (cw, mode, thr, maxw)

    tm, c = logits.shape

    # one-hot of the target class (TPU needs >=2D iota)
    class_ids = jax.lax.broadcasted_iota(jnp.int32, (tm, c), dimension=1)
    onehot = (class_ids == tgt).astype(jnp.float32)   # [TM, C]

    # log-softmax at the target class without materializing log_softmax over [TM, C]
    m = jnp.max(logits, axis=-1, keepdims=True)                            # [TM, 1]
    lse = jnp.log(jnp.sum(jnp.exp(logits - m), axis=-1, keepdims=True))    # [TM, 1]
    logit_t = jnp.sum(onehot * logits, axis=-1, keepdims=True)             # [TM, 1]
    logp_t = (logit_t - m) - lse                                           # [TM, 1]

    # fused per-class parameter gather on the MXU: [TM, C] @ [C, 4] -> [TM, 4]
    g = jnp.dot(onehot, params, preferred_element_type=jnp.float32)
    w_t    = g[:, 0:1]
    mode_t = g[:, 1:2]
    thr_t  = g[:, 2:3]
    maxw_t = g[:, 3:4]

    standard_loss = -w_t * logp_t                                          # [TM, 1]

    interp = maxw_t - (area - thr_t) / (mode_t - thr_t) * (maxw_t - 1.0)
    size_w = jnp.where(area < mode_t,
                       jnp.where(area < thr_t, maxw_t, interp),
                       jnp.ones_like(area))                                # [TM, 1]

    # mask rows outside the real batch (partial last tile / over-provisioned core slot)
    tile_idx = pl.program_id(0) * steps_per_core + s
    row = jax.lax.broadcasted_iota(jnp.int32, (tm, 1), dimension=0)
    valid = (tile_idx * tm + row) < n_valid
    weighted = jnp.where(valid, standard_loss * size_w, 0.0)

    acc_ref[...] += jnp.sum(weighted).reshape(1, 1)

    @pl.when(s == pl.num_programs(1) - 1)
    def _finalize():
        out_ref[...] = acc_ref[...]


def double_objective_weighted_cross_entropy(predictions, targets, area,
                                            class_modes, bottom_thresholds,
                                            max_weights, class_weights,
                                            *, tile_rows=512, num_cores=2):
    """predictions: [N, C] (any float dtype); targets: [N] int; area: [N]; params: [C]."""
    n, c = predictions.shape
    tgt2 = targets.astype(jnp.int32).reshape(n, 1)
    area2 = area.astype(jnp.float32).reshape(n, 1)
    params = jnp.stack(
        [class_weights, class_modes, bottom_thresholds, max_weights],
        axis=1).astype(jnp.float32)                                # [C, 4]

    tm = min(tile_rows, _round_up(n, 8))
    total_tiles = pl.cdiv(n, tm)
    nc = min(num_cores, total_tiles)
    steps_per_core = pl.cdiv(total_tiles, nc)

    def tile_map(ci, si):
        # clamp so over-provisioned (core, step) slots re-read the last valid tile;
        # their contribution is masked to zero inside the kernel.
        return (jnp.minimum(ci * steps_per_core + si, total_tiles - 1), 0)

    kernel = functools.partial(_dowce_kernel, n_valid=n, steps_per_core=steps_per_core)

    partials = pl.pallas_call(
        kernel,
        out_shape=jax.ShapeDtypeStruct((nc, 1), jnp.float32),
        grid_spec=pltpu.PrefetchScalarGridSpec(
            num_scalar_prefetch=0,
            grid=(nc, steps_per_core),
            in_specs=[
                pl.BlockSpec((tm, c), tile_map),                       # predictions (native dtype)
                pl.BlockSpec((tm, 1), tile_map),                       # targets
                pl.BlockSpec((tm, 1), tile_map),                       # area
                pl.BlockSpec((c, 4), lambda ci, si: (0, 0)),           # stacked class params
            ],
            out_specs=pl.BlockSpec((1, 1), lambda ci, si: (ci, 0)),    # per-core partial sum
            scratch_shapes=[pltpu.VMEM((1, 1), jnp.float32)],
        ),
        compiler_params=pltpu.CompilerParams(
            dimension_semantics=("parallel", "arbitrary")),
    )(predictions, tgt2, area2, params)

    return jnp.sum(partials) / jnp.float32(n)


def _reference(predictions, targets, area, class_modes, thrs, maxw, cw):
    # pure-JAX reference for sanity checking
    log_sm = jax.nn.log_softmax(predictions.astype(jnp.float32), axis=-1)
    logp_t = jnp.take_along_axis(log_sm, targets[:, None], axis=-1)[:, 0]
    w_t = cw[targets]
    std = -w_t * logp_t
    mode_t = class_modes[targets]
    thr_t = thrs[targets]
    maxw_t = maxw[targets]
    interp = maxw_t - (area - thr_t) / (mode_t - thr_t) * (maxw_t - 1.0)
    size_w = jnp.where(area < mode_t, jnp.where(area < thr_t, maxw_t, interp), 1.0)
    return jnp.mean(std * size_w)


if __name__ == "__main__":
    key = jax.random.PRNGKey(0)

    # deterministic "module parameters" (C = 4 classes)
    class_weights = jnp.array([1.0, 2.0, 0.5, 1.5], dtype=jnp.float32)
    class_modes = jnp.array([10.0, 20.0, 30.0, 40.0], dtype=jnp.float32)
    bottom_thresholds = jnp.array([2.0, 5.0, 8.0, 10.0], dtype=jnp.float32)
    max_weights = jnp.array([3.0, 2.5, 4.0, 2.0], dtype=jnp.float32)

    # (N, tile_rows): small single-tile case + a multi-tile case with a partial last
    # tile and an over-provisioned core slot, to exercise the grid/masking path.
    for n, tile_rows in ((8, 512), (300, 128)):
        k_pred, k_tgt, k_area, key = jax.random.split(key, 4)
        predictions = jax.random.normal(k_pred, (n, 4), dtype=jnp.float32)
        targets = jax.random.randint(k_tgt, (n,), 0, 4, dtype=jnp.int32)
        area = jax.random.uniform(k_area, (n,), dtype=jnp.float32,
                                  minval=0.0, maxval=50.0)

        loss = double_objective_weighted_cross_entropy(
            predictions, targets, area,
            class_modes, bottom_thresholds, max_weights, class_weights,
            tile_rows=tile_rows)
        loss = jax.block_until_ready(loss)

        ref = _reference(predictions, targets, area,
                         class_modes, bottom_thresholds, max_weights, class_weights)
        assert jnp.allclose(loss, ref, rtol=2e-5, atol=2e-5), (n, loss, ref)

    print("KERNEL_OK")
</pallas_src>

<mosaic_0001>
module attributes {stable_mosaic.version = 11 : i64} {
  func.func @_dowce_kernel(%arg0: i32, %arg1: i32, %arg2: memref<8x4xf32, #tpu.memory_space<vmem>>, %arg3: memref<8x1xi32, #tpu.memory_space<vmem>>, %arg4: memref<8x1xf32, #tpu.memory_space<vmem>>, %arg5: memref<4x4xf32, #tpu.memory_space<vmem>>, %arg6: memref<1x1xf32, #tpu.memory_space<vmem>>, %arg7: memref<1x1xf32, #tpu.memory_space<vmem>>) attributes {dimension_semantics = [#tpu.dimension_semantics<parallel>, #tpu.dimension_semantics<arbitrary>], iteration_bounds = array<i64: 1, 1>, scalar_prefetch = 0 : i64, scratch_operands = 1 : i64, tpu.core_type = #tpu.core_type<tc>, window_params = [{transform_indices = @transform_0, window_bounds = array<i64: 8, 4>}, {transform_indices = @transform_1, window_bounds = array<i64: 8, 1>}, {transform_indices = @transform_2, window_bounds = array<i64: 8, 1>}, {pipeline_mode = #tpu.pipeline_mode<synchronous>, transform_indices = @transform_3, window_bounds = array<i64: 4, 4>}, {transform_indices = @transform_4, window_bounds = array<i64: 1, 1>}]} {
    %c0_i32 = arith.constant 0 : i32
    %0 = arith.cmpi eq, %arg1, %c0_i32 : i32
    %1 = arith.extui %0 : i1 to i32
    %c0_i32_0 = arith.constant 0 : i32
    %2 = arith.cmpi ne, %1, %c0_i32_0 : i32
    scf.if %2 {
      %cst_23 = arith.constant 0.000000e+00 : f32
      %67 = vector.broadcast %cst_23 : f32 to vector<1x1xf32>
      %c0_24 = arith.constant 0 : index
      %c0_25 = arith.constant 0 : index
      %68 = vector.load %arg7[%c0_24, %c0_25] : memref<1x1xf32, #tpu.memory_space<vmem>>, vector<1x1xf32>
      tpu.vector_store %arg7[%c0_24, %c0_25], %67 {strides = array<i32>} : memref<1x1xf32, #tpu.memory_space<vmem>>, vector<1x1xf32>,
    } else {
    }
    %c0 = arith.constant 0 : index
    %c0_1 = arith.constant 0 : index
    %3 = vector.load %arg2[%c0, %c0_1] : memref<8x4xf32, #tpu.memory_space<vmem>>, vector<8x4xf32>
    %c0_2 = arith.constant 0 : index
    %c0_3 = arith.constant 0 : index
    %4 = vector.load %arg3[%c0_2, %c0_3] : memref<8x1xi32, #tpu.memory_space<vmem>>, vector<8x1xi32>
    %c0_4 = arith.constant 0 : index
    %c0_5 = arith.constant 0 : index
    %5 = vector.load %arg4[%c0_4, %c0_5] : memref<8x1xf32, #tpu.memory_space<vmem>>, vector<8x1xf32>
    %c0_6 = arith.constant 0 : index
    %c0_7 = arith.constant 0 : index
    %6 = vector.load %arg5[%c0_6, %c0_7] : memref<4x4xf32, #tpu.memory_space<vmem>>, vector<4x4xf32>
    %7 = tpu.iota {dimensions = array<i32: 1>} : vector<8x4xi32>
    %8 = vector.broadcast %4 : vector<8x1xi32> to vector<8x4xi32>
    %9 = arith.cmpi eq, %7, %8 : vector<8x4xi32>
    %10 = arith.extui %9 : vector<8x4xi1> to vector<8x4xi32>
    %11 = arith.sitofp %10 : vector<8x4xi32> to vector<8x4xf32>
    %cst = arith.constant dense<0xFF800000> : vector<8xf32>
    %12 = vector.multi_reduction <maximumf>, %3, %cst [1] : vector<8x4xf32> to vector<8xf32>
    %13 = vector.shape_cast %12 : vector<8xf32> to vector<8x1xf32>
    %14 = vector.broadcast %13 : vector<8x1xf32> to vector<8x4xf32>
    %15 = arith.subf %3, %14 : vector<8x4xf32>
    %16 = math.exp %15 : vector<8x4xf32>
    %cst_8 = arith.constant dense<0.000000e+00> : vector<8xf32>
    %17 = vector.multi_reduction <add>, %16, %cst_8 [1] : vector<8x4xf32> to vector<8xf32>
    %18 = vector.shape_cast %17 : vector<8xf32> to vector<8x1xf32>
    %19 = math.log %18 : vector<8x1xf32>
    %20 = arith.mulf %11, %3 : vector<8x4xf32>
    %cst_9 = arith.constant dense<0.000000e+00> : vector<8xf32>
    %21 = vector.multi_reduction <add>, %20, %cst_9 [1] : vector<8x4xf32> to vector<8xf32>
    %22 = vector.shape_cast %21 : vector<8xf32> to vector<8x1xf32>
    %23 = arith.subf %22, %13 : vector<8x1xf32>
    %24 = arith.subf %23, %19 : vector<8x1xf32>
    %cst_10 = arith.constant dense<0.000000e+00> : vector<8x4xf32>
    %25 = tpu.matmul %11, %6, %cst_10 {dimension_numbers = #tpu.dot_dimension_numbers<[1], [0], [0], [1], [0, 0, 1, 1], [], []>} : vector<8x4xf32>, vector<4x4xf32>, vector<8x4xf32> -> vector<8x4xf32>
    %26 = vector.extract_strided_slice %25 {offsets = [0, 0], sizes = [8, 1], strides = [1, 1]} : vector<8x4xf32> to vector<8x1xf32>
    %27 = vector.extract_strided_slice %25 {offsets = [0, 1], sizes = [8, 1], strides = [1, 1]} : vector<8x4xf32> to vector<8x1xf32>
    %28 = vector.extract_strided_slice %25 {offsets = [0, 2], sizes = [8, 1], strides = [1, 1]} : vector<8x4xf32> to vector<8x1xf32>
    %29 = vector.extract_strided_slice %25 {offsets = [0, 3], sizes = [8, 1], strides = [1, 1]} : vector<8x4xf32> to vector<8x1xf32>
    %cst_11 = arith.constant 0.000000e+00 : f32
    %30 = vector.broadcast %cst_11 : f32 to vector<8x1xf32>
    %31 = arith.subf %30, %26 : vector<8x1xf32>
    %32 = arith.mulf %31, %24 : vector<8x1xf32>
    %33 = arith.subf %5, %28 : vector<8x1xf32>
    %34 = arith.subf %27, %28 : vector<8x1xf32>
    %35 = arith.divf %33, %34 : vector<8x1xf32>
    %cst_12 = arith.constant 1.000000e+00 : f32
    %36 = vector.broadcast %cst_12 : f32 to vector<8x1xf32>
    %37 = arith.subf %29, %36 : vector<8x1xf32>
    %38 = arith.mulf %35, %37 : vector<8x1xf32>
    %39 = arith.subf %29, %38 : vector<8x1xf32>
    %40 = arith.cmpf olt, %5, %27 : vector<8x1xf32>
    %41 = arith.cmpf olt, %5, %28 : vector<8x1xf32>
    %42 = arith.select %41, %29, %39 : vector<8x1xi1>, vector<8x1xf32>
    %cst_13 = arith.constant 1.000000e+00 : f32
    %43 = vector.broadcast %cst_13 : f32 to vector<8x1xf32>
    %44 = arith.select %40, %42, %43 : vector<8x1xi1>, vector<8x1xf32>
    %c1_i32 = arith.constant 1 : i32
    %45 = arith.muli %arg0, %c1_i32 : i32
    %46 = arith.addi %45, %arg1 : i32
    %47 = tpu.iota {dimensions = array<i32: 0>} : vector<8x1xi32>
    %c8_i32 = arith.constant 8 : i32
    %48 = arith.muli %46, %c8_i32 : i32
    %49 = vector.broadcast %48 : i32 to vector<8x1xi32>
    %50 = arith.addi %49, %47 : vector<8x1xi32>
    %c8_i32_14 = arith.constant 8 : i32
    %51 = vector.broadcast %c8_i32_14 : i32 to vector<8x1xi32>
    %52 = arith.cmpi slt, %50, %51 : vector<8x1xi32>
    %53 = arith.mulf %32, %44 : vector<8x1xf32>
    %cst_15 = arith.constant 0.000000e+00 : f32
    %54 = vector.broadcast %cst_15 : f32 to vector<8x1xf32>
    %55 = arith.select %52, %53, %54 : vector<8x1xi1>, vector<8x1xf32>
    %c0_16 = arith.constant 0 : index
    %c0_17 = arith.constant 0 : index
    %56 = vector.load %arg7[%c0_16, %c0_17] : memref<1x1xf32, #tpu.memory_space<vmem>>, vector<1x1xf32>
    %57 = vector.shape_cast %55 : vector<8x1xf32> to vector<1x8x1xf32>
    %cst_18 = arith.constant dense<0.000000e+00> : vector<1xf32>
    %58 = vector.multi_reduction <add>, %57, %cst_18 [1, 2] : vector<1x8x1xf32> to vector<1xf32>
    %59 = vector.shape_cast %58 : vector<1xf32> to vector<1x1x1xf32>
    %60 = vector.extract %59[0, 0, 0] : f32 from vector<1x1x1xf32>
    %61 = vector.broadcast %60 : f32 to vector<1x1xf32>
    %62 = arith.addf %56, %61 : vector<1x1xf32>
    %c0_19 = arith.constant 0 : index
    %c0_20 = arith.constant 0 : index
    %63 = vector.load %arg7[%c0_19, %c0_20] : memref<1x1xf32, #tpu.memory_space<vmem>>, vector<1x1xf32>
    tpu.vector_store %arg7[%c0_19, %c0_20], %62 {strides = array<i32>} : memref<1x1xf32, #tpu.memory_space<vmem>>, vector<1x1xf32>,
    %c0_i32_21 = arith.constant 0 : i32
    %64 = arith.cmpi eq, %arg1, %c0_i32_21 : i32
    %65 = arith.extui %64 : i1 to i32
    %c0_i32_22 = arith.constant 0 : i32
    %66 = arith.cmpi ne, %65, %c0_i32_22 : i32
    scf.if %66 {
      %c0_23 = arith.constant 0 : index
      %c0_24 = arith.constant 0 : index
      %67 = vector.load %arg7[%c0_23, %c0_24] : memref<1x1xf32, #tpu.memory_space<vmem>>, vector<1x1xf32>
      %c0_25 = arith.constant 0 : index
      %c0_26 = arith.constant 0 : index
      %68 = vector.load %arg6[%c0_25, %c0_26] : memref<1x1xf32, #tpu.memory_space<vmem>>, vector<1x1xf32>
      tpu.vector_store %arg6[%c0_25, %c0_26], %67 {strides = array<i32>} : memref<1x1xf32, #tpu.memory_space<vmem>>, vector<1x1xf32>,
    } else {
    }
    return
  }
  func.func @transform_0(%arg0: i32, %arg1: i32) -> (i32, i32) {
    %c1_i32 = arith.constant 1 : i32
    %0 = arith.muli %arg0, %c1_i32 : i32
    %1 = arith.addi %0, %arg1 : i32
    %c0_i32 = arith.constant 0 : i32
    %2 = arith.minsi %1, %c0_i32 : i32
    %c0_i32_0 = arith.constant 0 : i32
    %c0_i32_1 = arith.constant 0 : i32
    return %2, %c0_i32_0 : i32, i32
  }
  func.func @transform_1(%arg0: i32, %arg1: i32) -> (i32, i32) {
    %c1_i32 = arith.constant 1 : i32
    %0 = arith.muli %arg0, %c1_i32 : i32
    %1 = arith.addi %0, %arg1 : i32
    %c0_i32 = arith.constant 0 : i32
    %2 = arith.minsi %1, %c0_i32 : i32
    %c0_i32_0 = arith.constant 0 : i32
    %c0_i32_1 = arith.constant 0 : i32
    return %2, %c0_i32_0 : i32, i32
  }
  func.func @transform_2(%arg0: i32, %arg1: i32) -> (i32, i32) {
    %c1_i32 = arith.constant 1 : i32
    %0 = arith.muli %arg0, %c1_i32 : i32
    %1 = arith.addi %0, %arg1 : i32
    %c0_i32 = arith.constant 0 : i32
    %2 = arith.minsi %1, %c0_i32 : i32
    %c0_i32_0 = arith.constant 0 : i32
    %c0_i32_1 = arith.constant 0 : i32
    return %2, %c0_i32_0 : i32, i32
  }
  func.func @transform_3(%arg0: i32, %arg1: i32) -> (i32, i32) {
    %c0_i32 = arith.constant 0 : i32
    %c0_i32_0 = arith.constant 0 : i32
    %c0_i32_1 = arith.constant 0 : i32
    return %c0_i32, %c0_i32_0 : i32, i32
  }
  func.func @transform_4(%arg0: i32, %arg1: i32) -> (i32, i32) {
    %c0_i32 = arith.constant 0 : i32
    %c0_i32_0 = arith.constant 0 : i32
    return %arg0, %c0_i32 : i32, i32
  }
}

</mosaic_0001>

<llo_original>
// kernel: tpu_custom_call.1
$region0: #{tpu_custom_call.1}
  #allocation0 [shape = 'u32[]', space=smem, size = 0x4, offset = 0x4, fixed_abs, tag = 'smem constant byte address 0x4 - core index']
  #allocation1 [shape = 'u32[144,128]{1,0:T(1,128)}', space=vmem, size = 0x12000, scoped, tag = 'internal scratch']
  #allocation2 [shape = 'f32[1,1]{1,0:T(1,128)}', space=vmem, size = 0x200, scoped, tag = 'scratch operand']
  %s0 = inlined_call_operand.vmem [shape: f32[8,4], index: 0, kind: input, shape index: {}]
  %s1 = inlined_call_operand.vmem [shape: s32[8,1], index: 1, kind: input, shape index: {}]
  %s2 = inlined_call_operand.vmem [shape: f32[8,1], index: 2, kind: input, shape index: {}]
  %s3 = inlined_call_operand.vmem [shape: f32[4,4], index: 3, kind: input, shape index: {}]
  %s4 = inlined_call_operand.hbm [shape: f32[1,1], index: 4, kind: output, shape index: {}]
  %s5 = sld [smem:[#allocation0]]
  $region34: #{tpu_custom_call.1} parent=0
    _
  %s7 = ssub.s32 1, %s5
  %s8 = scalar_select 0, %s7, %s5
  $region1: #{tpu_custom_call.1} parent=0
    #allocation3 [shape = 'u8[512]{0}', space=vmem, size = 0x400, scoped, tag = 'output window, operand 0, single buffered']
    #allocation4 [shape = 's32[1]{0}', space=sflag, size = 0x4, scoped, tag = 'scoped memory for tpu_custom_call.1']
    %9 = vsyncpa [#allocation4], 0
    // Predicated region
    $region2: #{tpu_custom_call.1} parent=1 // pred_check
      _
    $region3: #{tpu_custom_call.1} parent=1 // pred_check_branch
      %11 = sbr.rel (0) target = $region5
    $region4: #{tpu_custom_call.1} parent=1 // pred_region
      %s12 = sadd.s32 0, 0
      %p13 = scmp.lt.s32.totalorder %s12, 0
      %s14 = scalar_select %p13, %s12, 0
      %p15 = scmp.lt.s32.totalorder %s14, 0
      %s16 = scalar_select %p15, %s14, 0
      %s17 = smul.addr %s16, 8
      %s18 = scalar_lea.vmem %s0, %s17
      %s19 = sadd.s32 0, 0
      %p20 = scmp.lt.s32.totalorder %s19, 0
      %s21 = scalar_select %p20, %s19, 0
    $region5: #{tpu_custom_call.1} parent=1 // pred_fallthru
      _
    // Predicated region
    $region6: #{tpu_custom_call.1} parent=1 // pred_check
      _
    $region7: #{tpu_custom_call.1} parent=1 // pred_check_branch
      %23 = sbr.rel (0) target = $region9
    $region8: #{tpu_custom_call.1} parent=1 // pred_region
      %s24 = sadd.s32 0, 0
      %p25 = scmp.lt.s32.totalorder %s24, 0
      %s26 = scalar_select %p25, %s24, 0
      %p27 = scmp.lt.s32.totalorder %s26, 0
      %s28 = scalar_select %p27, %s26, 0
      %s29 = smul.addr %s28, 8
      %s30 = scalar_lea.vmem %s1, %s29
      %s31 = sadd.s32 0, 0
      %p32 = scmp.lt.s32.totalorder %s31, 0
      %s33 = scalar_select %p32, %s31, 0
    $region9: #{tpu_custom_call.1} parent=1 // pred_fallthru
      _
    // Predicated region
    $region10: #{tpu_custom_call.1} parent=1 // pred_check
      _
    $region11: #{tpu_custom_call.1} parent=1 // pred_check_branch
      %35 = sbr.rel (0) target = $region13
    $region12: #{tpu_custom_call.1} parent=1 // pred_region
      %s36 = sadd.s32 0, 0
      %p37 = scmp.lt.s32.totalorder %s36, 0
      %s38 = scalar_select %p37, %s36, 0
      %p39 = scmp.lt.s32.totalorder %s38, 0
      %s40 = scalar_select %p39, %s38, 0
      %s41 = smul.addr %s40, 8
      %s42 = scalar_lea.vmem %s2, %s41
      %s43 = sadd.s32 0, 0
      %p44 = scmp.lt.s32.totalorder %s43, 0
      %s45 = scalar_select %p44, %s43, 0
    $region13: #{tpu_custom_call.1} parent=1 // pred_fallthru
      _
    // Predicated region
    $region14: #{tpu_custom_call.1} parent=1 // pred_check
      _
    $region15: #{tpu_custom_call.1} parent=1 // pred_check_branch
      %47 = sbr.rel (0) target = $region17
    $region16: #{tpu_custom_call.1} parent=1 // pred_region
      _
    $region17: #{tpu_custom_call.1} parent=1 // pred_fallthru
      _
    %s48 = sadd.s32 0, 0
    %p49 = scmp.lt.s32.totalorder %s48, 0
    %s50 = scalar_select %p49, %s48, 0
    %p51 = scmp.lt.s32.totalorder %s50, 0
    %s52 = scalar_select %p51, %s50, 0
    %s53 = smul.addr %s52, 8
    %s54 = scalar_lea.vmem %s0, %s53
    %s55 = sadd.s32 0, 0
    %p56 = scmp.lt.s32.totalorder %s55, 0
    %s57 = scalar_select %p56, %s55, 0
    %p58 = scmp.lt.s32.totalorder %s57, 0
    %s59 = scalar_select %p58, %s57, 0
    %s60 = smul.addr %s59, 8
    %s61 = scalar_lea.vmem %s1, %s60
    %s62 = sadd.s32 0, 0
    %p63 = scmp.lt.s32.totalorder %s62, 0
    %s64 = scalar_select %p63, %s62, 0
    %p65 = scmp.lt.s32.totalorder %s64, 0
    %s66 = scalar_select %p65, %s64, 0
    %s67 = smul.addr %s66, 8
    %s68 = scalar_lea.vmem %s2, %s67
    %s69 = sadd.s32 0, 0
    %p70 = scmp.lt.s32.totalorder %s69, 0
    %s71 = scalar_select %p70, %s69, 0
    %p72 = scmp.lt.s32.totalorder %s71, 0
    %s73 = scalar_select %p72, %s71, 0
    %s74 = smul.addr %s73, 8
    %s75 = scalar_lea.vmem %s0, %s74
    %s76 = sadd.s32 0, 0
    %p77 = scmp.lt.s32.totalorder %s76, 0
    %s78 = scalar_select %p77, %s76, 0
    %s79 = sadd.s32 0, 0
    %p80 = scmp.lt.s32.totalorder %s79, 0
    %s81 = scalar_select %p80, %s79, 0
    %p82 = scmp.lt.s32.totalorder %s81, 0
    %s83 = scalar_select %p82, %s81, 0
    %s84 = smul.addr %s83, 8
    %s85 = scalar_lea.vmem %s1, %s84
    %s86 = sadd.s32 0, 0
    %p87 = scmp.lt.s32.totalorder %s86, 0
    %s88 = scalar_select %p87, %s86, 0
    %s89 = sadd.s32 0, 0
    %p90 = scmp.lt.s32.totalorder %s89, 0
    %s91 = scalar_select %p90, %s89, 0
    %p92 = scmp.lt.s32.totalorder %s91, 0
    %s93 = scalar_select %p92, %s91, 0
    %s94 = smul.addr %s93, 8
    %s95 = scalar_lea.vmem %s2, %s94
    %s96 = sadd.s32 0, 0
    %p97 = scmp.lt.s32.totalorder %s96, 0
    %s98 = scalar_select %p97, %s96, 0
    %p99 = scmp.eq.s32.totalorder 0, 0
    // Predicated region
    $region18: #{tpu_custom_call.1} parent=1 // pred_check
      %p100 = pneg %p99
    $region19: #{tpu_custom_call.1} parent=1 // pred_check_branch
      %102 = sbr.rel (%p100) target = $region21
    $region20: #{tpu_custom_call.1} parent=1 // pred_region
      %vm103 = vcmask 0
      %104 = vst.msk [vmem:[#allocation2] sm:$0x1] %vm103, 0.0
    $region21: #{tpu_custom_call.1} parent=1 // pred_fallthru
      _
    %v105 = vld [vmem:[%s75] sm:$0xff]
    %v106 = vld [vmem:[%s85] sm:$0xff]
    %v107 = vld [vmem:[%s95] sm:$0xff]
    %v108 = vld [vmem:[%s3] sm:$0xf]
    %v109 = vlaneseq
    %v110 = vand.u32 %v109, 127
    %111 = vset.pattern.permute.xlu0 0
    %112 = vperm.xlu0 %111, %v106
    %v113 = vpop.permute.xlu0 %112
    %vm114 = vcmp.eq.s32.totalorder %v110, %v113
    %v115 = vsel %vm114, 1, 0
    %v116 = vcvt.s32.f32 %v115
    %vm117 = vcmask 31744
    %v118 = vsel %vm117, %v105, -inf
    %119 = vmax.xlane.f32.xlu0 %v118
    %v120 = vpop.xlane.xlu0 %119
    %v121 = vsub.f32 %v105, %v120
    %v122 = vmul.f32 %v121, 1.442695
    %v123 = vpow.pop %v122
    %v124 = vsel %vm117, %v123, 0.0
    %125 = vadd.xlane.f32.xlu0 %v124
    %v126 = vpop.xlane.xlu0 %125
    %v127 = vlog2.pop %v126
    %v128 = vmul.f32 %v127, 0.6931472
    %v129 = vmul.f32 %v116, %v105
    %v130 = vsel %vm117, %v129, 0.0
    %131 = vadd.xlane.f32.xlu0 %v130
    %v132 = vpop.xlane.xlu0 %131
    %v133 = vsub.f32 %v132, %v120
    %v134 = vsub.f32 %v133, %v128
    %v136 = vsel %vm117, %v116, 0
    %vm138 = vcmask 1043456
    %v140 = vsel %vm138, %v108, 0
    %142 = vmatprep.subr.mxu0 0.0
    %143 = vmatpush1.msra.mxu0 %v140
    %144 = vmatprep.subr.mxu0 0.0
    %145 = vmatpush1.msra.mxu0 0.0
    %146 = vmatprep.subr.mxu0 0.0
    %147 = vmatpush1.msra.mxu0 0.0
    %148 = vmatprep.subr.mxu0 0.0
    %149 = vmatpush1.msra.mxu0 0.0
    %150 = vmatprep.subr.mxu0 0.0
    %151 = vmatpush1.msra.mxu0 0.0
    %152 = vmatprep.subr.mxu0 0.0
    %153 = vmatpush1.msra.mxu0 0.0
    %154 = vmatprep.subr.mxu0 0.0
    %155 = vmatpush1.msra.mxu0 0.0
    %156 = vmatprep.subr.mxu0 0.0
    %157 = vmatpush1.msra.mxu0 0.0
    %158 = vmatprep.subr.mxu0 0.0
    %159 = vmatpush1.msra.mxu0 0.0
    %160 = vmatprep.subr.mxu0 0.0
    %161 = vmatpush1.msra.mxu0 0.0
    %162 = vmatprep.subr.mxu0 0.0
    %163 = vmatpush1.msra.mxu0 0.0
    %164 = vmatprep.subr.mxu0 0.0
    %165 = vmatpush1.msra.mxu0 0.0
    %166 = vmatprep.subr.mxu0 0.0
    %167 = vmatpush1.msra.mxu0 0.0
    %168 = vmatprep.subr.mxu0 0.0
    %169 = vmatpush1.msra.mxu0 0.0
    %170 = vmatprep.subr.mxu0 0.0
    %171 = vmatpush1.msra.mxu0 0.0
    %172 = vmatprep.subr.mxu0 0.0
    %173 = vmatpush1.msra.mxu0 0.0
    %174 = vmatprep.subr.mxu0 0.0
    %175 = vmatpush1.msra.mxu0 0.0
    %176 = vmatprep.subr.mxu0 0.0
    %177 = vmatpush1.msra.mxu0 0.0
    %178 = vmatprep.subr.mxu0 0.0
    %179 = vmatpush1.msra.mxu0 0.0
    %180 = vmatprep.subr.mxu0 0.0
    %181 = vmatpush1.msra.mxu0 0.0
    %182 = vmatprep.subr.mxu0 0.0
    %183 = vmatpush1.msra.mxu0 0.0
    %184 = vmatprep.subr.mxu0 0.0
    %185 = vmatpush1.msra.mxu0 0.0
    %186 = vmatprep.subr.mxu0 0.0
    %187 = vmatpush1.msra.mxu0 0.0
    %188 = vmatprep.subr.mxu0 0.0
    %189 = vmatpush1.msra.mxu0 0.0
    %190 = vmatprep.subr.mxu0 0.0
    %191 = vmatpush1.msra.mxu0 0.0
    %192 = vmatprep.subr.mxu0 0.0
    %193 = vmatpush1.msra.mxu0 0.0
    %194 = vmatprep.subr.mxu0 0.0
    %195 = vmatpush1.msra.mxu0 0.0
    %196 = vmatprep.subr.mxu0 0.0
    %197 = vmatpush1.msra.mxu0 0.0
    %198 = vmatprep.subr.mxu0 0.0
    %199 = vmatpush1.msra.mxu0 0.0
    %200 = vmatprep.subr.mxu0 0.0
    %201 = vmatpush1.msra.mxu0 0.0
    %202 = vmatprep.subr.mxu0 0.0
    %203 = vmatpush1.msra.mxu0 0.0
    %204 = vmatprep.subr.mxu0 0.0
    %205 = vmatpush1.msra.mxu0 0.0
    %206 = vmatprep.mubr.f32.mxu0 0.0
    %207 = vmatmul.mubr.f32.gmra.mrb[0].mxu0 %v136
    %v208 = vpop.f32.mrb[0].mxu0
    %v209 = vadd.f32 0.0, %v208
    %v210 = vpop.f32.mrb[0].mxu0
    %211 = vdwg.mxu0
    %v212 = vsub.f32 0.0, %v209
    %v213 = vmul.f32 %v212, %v134
    %215 = vrot.lane.b32.xlu0 %v209, 126
    %v216 = vpop.permute.xlu0 %215
    %v218 = vsub.f32 %v107, %v216
    %219 = vrot.lane.b32.xlu0 %v209, 127
    %v220 = vpop.permute.xlu0 %219
    %v222 = vsub.f32 %v209, %v220
    %224 = vrot.lane.b32.xlu0 %v222, 127
    %v225 = vpop.permute.xlu0 %224
    %v227 = vrcp.pop %v225
    %v228 = vmul.f32 %v218, %v227
    %v229 = vsub.f32 %v209, 1.0
    %231 = vrot.lane.b32.xlu0 %v229, 125
    %v232 = vpop.permute.xlu0 %231
    %v234 = vmul.f32 %v228, %v232
    %236 = vrot.lane.b32.xlu0 %v234, 3
    %v237 = vpop.permute.xlu0 %236
    %v239 = vsub.f32 %v209, %v237
    %vm240 = vcmp.lt.f32.partialorder %v107, %v220
    %vm241 = vcmp.lt.f32.partialorder %v107, %v216
    %242 = vrot.lane.b32.xlu0 %v209, 125
    %v243 = vpop.permute.xlu0 %242
    %246 = vrot.lane.b32.xlu0 %v239, 125
    %v247 = vpop.permute.xlu0 %246
    %v249 = vsel %vm241, %v243, %v247
    %v250 = vsel %vm240, %v249, 1.0
    %s251 = sadd.s32 0, 0
    %v252 = vlaneseq
    %v253 = vshrl.u32 %v252, 7
    %s254 = smul.u32 %s251, 8
    %v255 = vstv %s254
    %v256 = vadd.s32 %v255, %v253
    %vm257 = vcmp.lt.s32.totalorder %v256, 8
    %v258 = vmul.f32 %v213, %v250
    %v259 = vsel %vm257, %v258, 0.0
    %v260 = vld [vmem:[#allocation2] sm:$0x1]
    %vm261 = vcmask 7168
    %v262 = vsel %vm261, %v259, 0.0
    %263 = vadd.xlane.f32.xlu0 %v262
    %v264 = vpop.xlane.xlu0 %263
    %v265 = vrot.slane %v264, 4
    %v266 = vadd.f32 %v264, %v265
    %v267 = vrot.slane %v266, 2
    %v268 = vadd.f32 %v266, %v267
    %v269 = vrot.slane %v268, 1
    %v270 = vadd.f32 %v268, %v269
    %s271 = vtos %v270
    %v272 = vstv %s271
    %v273 = vadd.f32 %v260, %v272
    %vm274 = vcmask 0
    %275 = vst.msk [vmem:[#allocation2] sm:$0x1] %vm274, %v273
    // Predicated region
    $region22: #{tpu_custom_call.1} parent=1 // pred_check
      %p276 = pneg %p99
    $region23: #{tpu_custom_call.1} parent=1 // pred_check_branch
      %278 = sbr.rel (%p276) target = $region25
    $region24: #{tpu_custom_call.1} parent=1 // pred_region
      %v279 = vld [vmem:[#allocation2] sm:$0x1]
      %280 = vst.msk [vmem:[#allocation3] sm:$0x1] %vm274, %v279
    $region25: #{tpu_custom_call.1} parent=1 // pred_fallthru
      _
    // Predicated region
    $region26: #{tpu_custom_call.1} parent=1 // pred_check
      _
    $region27: #{tpu_custom_call.1} parent=1 // pred_check_branch
      %282 = sbr.rel (0) target = $region29
    $region28: #{tpu_custom_call.1} parent=1 // pred_region
      %s284 = ssub.s32 16, 16
      %285 = vsyncadd [#allocation4], %s284
      %s287 = sshll.u32 [#allocation3], 4
      %s288 = int_to_ptr.vmem [resolvable:$true] %s287
      %290 = dma.vmem_to_hbm [thread:$0]  %s288, 16, %s4, [#allocation4]
    $region29: #{tpu_custom_call.1} parent=1 // pred_fallthru
      _
    // Predicated region
    $region30: #{tpu_custom_call.1} parent=1 // pred_check
      _
    $region31: #{tpu_custom_call.1} parent=1 // pred_check_branch
      %292 = sbr.rel (0) target = $region33
    $region32: #{tpu_custom_call.1} parent=1 // pred_region
      %293 = dma.done [#allocation4], 16
    $region33: #{tpu_custom_call.1} parent=1 // pred_fallthru
      _
    %294 = vsyncpa [#allocation4], 1

</llo_original>
